<compile_context>
chip_gen: v6e
topology: v6e:2x2x1
jax: 0.10.0
libtpu: 0.0.40
codegen_flags: <defaults>
</compile_context>

<pallas_src>
import functools

import jax
import jax.numpy as jnp
import numpy as np
from jax.experimental import pallas as pl
from jax.experimental.pallas import tpu as pltpu


def _spatial_gather_kernel(probs_ref, feats_ref, out_ref, m_sc, l_sc, acc_sc,
                           *, scale, hw, hw_tile):
    # probs_ref: (1, K, T)   class-logit tile       (T = hw_tile, spatial on lanes)
    # feats_ref: (1, Ct, T)  feature tile           (Ct = c_tile)
    # out_ref  : (1, Ct, K)  per-(batch, C-chunk) context, written on last step
    # m_sc/l_sc: (K, 1) f32  running max / running sum of exp
    # acc_sc   : (Ct, K) f32 unnormalized context accumulator
    hw_idx = pl.program_id(2)
    n_hw = pl.num_programs(2)

    @pl.when(hw_idx == 0)
    def _init():
        m_sc[...] = jnp.full(m_sc.shape, -jnp.inf, dtype=m_sc.dtype)
        l_sc[...] = jnp.zeros(l_sc.shape, dtype=l_sc.dtype)
        acc_sc[...] = jnp.zeros(acc_sc.shape, dtype=acc_sc.dtype)

    s_full = probs_ref[0].astype(jnp.float32)             # (K, T)
    if scale != 1.0:
        s_full = s_full * scale
    f_full = feats_ref[0]                                  # (Ct, T)

    def online_step(s, f):
        m_prev = m_sc[...]                                 # (K, 1)
        m_new = jnp.maximum(m_prev, jnp.max(s, axis=-1, keepdims=True))
        alpha = jnp.exp(m_prev - m_new)                    # (K, 1)
        p = jnp.exp(s - m_new)                             # (K, T)
        l_sc[...] = alpha * l_sc[...] + jnp.sum(p, axis=-1, keepdims=True)
        m_sc[...] = m_new
        # (Ct, T) x (K, T) contracting on the shared lane dim -> (Ct, K).
        # The large feats tile is the LHS in natural MXU orientation; only the
        # small probs tile is on the transposed side (no big XLU transpose).
        partial = jax.lax.dot_general(
            f, p.astype(f.dtype),
            dimension_numbers=(((1,), (1,)), ((), ())),
            preferred_element_type=jnp.float32)            # (Ct, K)
        acc_sc[...] = acc_sc[...] * jnp.transpose(alpha) + partial

    rem = hw % hw_tile
    if rem == 0:
        online_step(s_full, f_full)
    else:
        # Ragged tail: only the final HW step pays the mask cost; all other
        # steps take the unmasked fast path.
        @pl.when(hw_idx < n_hw - 1)
        def _fast():
            online_step(s_full, f_full)

        @pl.when(hw_idx == n_hw - 1)
        def _tail():
            # Keep BOTH masks: -inf on logits AND zeros on feats (padded VMEM
            # columns may hold stale/NaN data; 0 * NaN would poison the acc).
            col_k = jax.lax.broadcasted_iota(jnp.int32, s_full.shape, 1)
            s_m = jnp.where(col_k < rem, s_full, -jnp.inf)
            col_c = jax.lax.broadcasted_iota(jnp.int32, f_full.shape, 1)
            f_m = jnp.where(col_c < rem, f_full, jnp.zeros_like(f_full))
            online_step(s_m, f_m)

    @pl.when(hw_idx == n_hw - 1)
    def _finalize():
        # Deferred normalization touches only K values per chunk -> exact recip.
        inv_l = pl.reciprocal(l_sc[...], approx=False)     # (K, 1)
        out_ref[0] = (acc_sc[...] * jnp.transpose(inv_l)).astype(out_ref.dtype)


def _tpu_params():
    """(vmem_capacity_bytes, tensorcores_per_chip, is_v5) with safe fallbacks."""
    vmem_cap = 64 << 20          # conservative fallback (v7x per-TC VMEM)
    n_tc, is_v5 = 1, False
    try:
        vmem_cap = int(pltpu.get_tpu_info().vmem_capacity_bytes)
    except Exception:
        pass
    try:
        kind = jax.devices()[0].device_kind.lower()
        is_v5 = "v5" in kind
        if "v7" in kind:
            n_tc = 2
    except Exception:
        pass
    return vmem_cap, n_tc, is_v5


def _pick_hw_tile(hw, c_tile, k, itemsize, max_tile, budget_bytes):
    """Largest 128-aligned HW tile whose double-buffered feats+probs tiles fit
    the per-generation VMEM budget."""
    if hw <= max_tile:
        return hw
    per_col = 2 * (c_tile + k) * itemsize        # double-buffered bytes / column
    t = min(max_tile, (budget_bytes // per_col) // 128 * 128)
    return max(int(t), 128)


def spatial_gather(feats, probs, scale=1.0, hw_tile=None, c_tile=None):
    """feats: (B, C, H, W), probs: (B, K, H, W) -> (B, C, K, 1)."""
    B, C, H, W = feats.shape
    Bp, K, Hp, Wp = probs.shape
    assert (B, H, W) == (Bp, Hp, Wp)
    HW = H * W

    # Free reshapes only -- neither big tensor is transposed on the host.
    probs_flat = probs.reshape(B, K, HW)              # (B, K, HW)
    feats_flat = feats.reshape(B, C, HW)              # (B, C, HW)

    vmem_cap, n_tc, is_v5 = _tpu_params()

    # Optional C split: gives the 2nd TensorCore (v7x) a parallel axis when the
    # batch alone cannot feed both cores.  Stays off (n_c = 1) on 1-TC chips.
    if c_tile is None:
        if n_tc >= 2 and B < n_tc and C >= 256 and (C // 2) % 8 == 0:
            c_tile = C // 2
        else:
            c_tile = C
    c_tile = int(min(c_tile, C))
    n_c = pl.cdiv(C, c_tile)

    itemsize = max(feats_flat.dtype.itemsize, probs_flat.dtype.itemsize)
    if hw_tile is None:
        max_tile = 2048 if is_v5 else 4096
        budget = min(vmem_cap // 2, 32 << 20)
        hw_tile = _pick_hw_tile(HW, c_tile, K, itemsize, max_tile, budget)
    n_hw = pl.cdiv(HW, hw_tile)

    out_dtype = feats.dtype

    # Explicit VMEM budget from the chosen tiles (double-buffered) + scratch,
    # clamped per generation (>= 16 MiB headroom below physical VMEM).
    probs_tile_b = K * hw_tile * probs_flat.dtype.itemsize
    feats_tile_b = c_tile * hw_tile * feats_flat.dtype.itemsize
    out_tile_b = c_tile * K * jnp.dtype(out_dtype).itemsize
    scratch_b = (2 * K * 128 + max(c_tile, 8) * 128) * 4
    vmem_limit = 2 * (probs_tile_b + feats_tile_b + out_tile_b) + scratch_b + (2 << 20)
    ceiling = max(min(vmem_cap - (16 << 20), 96 << 20), 16 << 20)
    vmem_limit = int(min(max(vmem_limit, 16 << 20), ceiling))

    cost = pl.CostEstimate(
        flops=2 * B * K * HW * C,
        transcendentals=B * n_c * K * HW,
        bytes_accessed=(B * n_c * K * HW * probs_flat.dtype.itemsize
                        + B * C * HW * feats_flat.dtype.itemsize
                        + B * C * K * jnp.dtype(out_dtype).itemsize),
    )

    kernel = functools.partial(_spatial_gather_kernel,
                               scale=float(scale), hw=HW, hw_tile=hw_tile)

    ctx = pl.pallas_call(
        kernel,
        out_shape=jax.ShapeDtypeStruct((B, C, K), out_dtype),
        grid_spec=pltpu.PrefetchScalarGridSpec(
            num_scalar_prefetch=0,
            grid=(B, n_c, n_hw),                          # reduction (HW) axis last
            in_specs=[
                pl.BlockSpec((1, K, hw_tile), lambda b, c, h: (b, 0, h)),      # probs
                pl.BlockSpec((1, c_tile, hw_tile), lambda b, c, h: (b, c, h)),  # feats
            ],
            out_specs=pl.BlockSpec((1, c_tile, K), lambda b, c, h: (b, c, 0)),
            scratch_shapes=[
                pltpu.VMEM((K, 1), jnp.float32),          # running max
                pltpu.VMEM((K, 1), jnp.float32),          # running sum of exp
                pltpu.VMEM((c_tile, K), jnp.float32),     # unnormalized context
            ],
        ),
        compiler_params=pltpu.CompilerParams(
            dimension_semantics=("parallel", "parallel", "arbitrary"),
            vmem_limit_bytes=vmem_limit,
        ),
        cost_estimate=cost,
    )(probs_flat, feats_flat)                             # (B, C, K)

    # (B, C, K) -> (B, C, K, 1): pure unsqueeze, no transpose anywhere.
    return ctx[..., None]


def _reference(feats, probs, scale):
    B, C, H, W = feats.shape
    K = probs.shape[1]
    p = probs.reshape(B, K, -1)
    f = jnp.transpose(feats.reshape(B, C, -1), (0, 2, 1))
    p = jax.nn.softmax(scale * p, axis=2)
    ctx = jnp.einsum("bks,bsc->bkc", p, f)
    return jnp.transpose(ctx, (0, 2, 1))[..., None]


if __name__ == "__main__":
    key = jax.random.PRNGKey(0)
    k1, k2 = jax.random.split(key)

    # Case 1: single HW tile (HW = 256 fits one block).
    B, C, K, H, W = 2, 8, 4, 16, 16
    scale = 1.0
    feats = jax.random.normal(k1, (B, C, H, W), dtype=jnp.float32)
    probs = jax.random.normal(k2, (B, K, H, W), dtype=jnp.float32)
    out = jax.block_until_ready(spatial_gather(feats, probs, scale))
    assert out.shape == (B, C, K, 1), out.shape
    np.testing.assert_allclose(np.asarray(out),
                               np.asarray(_reference(feats, probs, scale)),
                               rtol=1e-5, atol=1e-5)

    # Case 2: streamed online-softmax path (two 128-wide HW tiles).
    out2 = jax.block_until_ready(spatial_gather(feats, probs, scale, hw_tile=128))
    np.testing.assert_allclose(np.asarray(out2),
                               np.asarray(_reference(feats, probs, scale)),
                               rtol=1e-5, atol=1e-5)

    # Case 3: ragged tail (HW = 320 not divisible by the 256-wide tile)
    # exercises the masked-final-step path, with a non-unit scale.
    k3, k4 = jax.random.split(k1)
    H3, W3, scale3 = 16, 20, 0.5
    feats3 = jax.random.normal(k3, (B, C, H3, W3), dtype=jnp.float32)
    probs3 = jax.random.normal(k4, (B, K, H3, W3), dtype=jnp.float32)
    out3 = jax.block_until_ready(spatial_gather(feats3, probs3, scale3, hw_tile=256))
    np.testing.assert_allclose(np.asarray(out3),
                               np.asarray(_reference(feats3, probs3, scale3)),
                               rtol=1e-5, atol=1e-5)

    # Case 4: C-chunked grid axis (the megacore-style split used on v7x).
    k5, k6 = jax.random.split(k2)
    B4, C4, scale4 = 1, 16, 0.75
    feats4 = jax.random.normal(k5, (B4, C4, H, W), dtype=jnp.float32)
    probs4 = jax.random.normal(k6, (B4, K, H, W), dtype=jnp.float32)
    out4 = jax.block_until_ready(
        spatial_gather(feats4, probs4, scale4, hw_tile=128, c_tile=8))
    np.testing.assert_allclose(np.asarray(out4),
                               np.asarray(_reference(feats4, probs4, scale4)),
                               rtol=1e-5, atol=1e-5)

    # Case 5: bf16 inputs (halved HBM traffic); softmax/accumulation stay f32,
    # but the MXU weights are bf16, so compare with a looser tolerance.
    featsb = feats.astype(jnp.bfloat16)
    probsb = probs.astype(jnp.bfloat16)
    outb = jax.block_until_ready(spatial_gather(featsb, probsb, scale))
    refb = _reference(featsb.astype(jnp.float32), probsb.astype(jnp.float32), scale)
    np.testing.assert_allclose(np.asarray(outb.astype(jnp.float32)),
                               np.asarray(refb), rtol=5e-2, atol=5e-2)

    print("KERNEL_OK")
</pallas_src>

<mosaic_0001>
module attributes {stable_mosaic.version = 11 : i64} {
  func.func @_spatial_gather_kernel(%arg0: i32, %arg1: i32, %arg2: i32, %arg3: memref<1x4x256xf32, #tpu.memory_space<vmem>>, %arg4: memref<1x8x256xf32, #tpu.memory_space<vmem>>, %arg5: memref<1x8x4xf32, #tpu.memory_space<vmem>>, %arg6: memref<4x1xf32, #tpu.memory_space<vmem>>, %arg7: memref<4x1xf32, #tpu.memory_space<vmem>>, %arg8: memref<8x4xf32, #tpu.memory_space<vmem>>) attributes {dimension_semantics = [#tpu.dimension_semantics<parallel>, #tpu.dimension_semantics<parallel>, #tpu.dimension_semantics<arbitrary>], iteration_bounds = array<i64: 2, 1, 1>, scalar_prefetch = 0 : i64, scratch_operands = 3 : i64, tpu.core_type = #tpu.core_type<tc>, window_params = [{transform_indices = @transform_0, window_bounds = array<i64: 1, 4, 256>}, {transform_indices = @transform_1, window_bounds = array<i64: 1, 8, 256>}, {transform_indices = @transform_2, window_bounds = array<i64: 1, 8, 4>}]} {
    %c0_i32 = arith.constant 0 : i32
    %0 = arith.cmpi eq, %arg2, %c0_i32 : i32
    %1 = arith.extui %0 : i1 to i32
    %c0_i32_0 = arith.constant 0 : i32
    %2 = arith.cmpi ne, %1, %c0_i32_0 : i32
    scf.if %2 {
      %cst_22 = arith.constant 0xFF800000 : f32
      %33 = vector.broadcast %cst_22 : f32 to vector<4x1xf32>
      %c0_23 = arith.constant 0 : index
      %c0_24 = arith.constant 0 : index
      %34 = vector.load %arg6[%c0_23, %c0_24] : memref<4x1xf32, #tpu.memory_space<vmem>>, vector<4x1xf32>
      tpu.vector_store %arg6[%c0_23, %c0_24], %33 {strides = array<i32>} : memref<4x1xf32, #tpu.memory_space<vmem>>, vector<4x1xf32>,
      %cst_25 = arith.constant 0.000000e+00 : f32
      %35 = vector.broadcast %cst_25 : f32 to vector<4x1xf32>
      %c0_26 = arith.constant 0 : index
      %c0_27 = arith.constant 0 : index
      %36 = vector.load %arg7[%c0_26, %c0_27] : memref<4x1xf32, #tpu.memory_space<vmem>>, vector<4x1xf32>
      tpu.vector_store %arg7[%c0_26, %c0_27], %35 {strides = array<i32>} : memref<4x1xf32, #tpu.memory_space<vmem>>, vector<4x1xf32>,
      %cst_28 = arith.constant 0.000000e+00 : f32
      %37 = vector.broadcast %cst_28 : f32 to vector<8x4xf32>
      %c0_29 = arith.constant 0 : index
      %c0_30 = arith.constant 0 : index
      %38 = vector.load %arg8[%c0_29, %c0_30] : memref<8x4xf32, #tpu.memory_space<vmem>>, vector<8x4xf32>
      tpu.vector_store %arg8[%c0_29, %c0_30], %37 {strides = array<i32>} : memref<8x4xf32, #tpu.memory_space<vmem>>, vector<8x4xf32>,
    } else {
    }
    %c0 = arith.constant 0 : index
    %c0_1 = arith.constant 0 : index
    %c0_2 = arith.constant 0 : index
    %3 = vector.load %arg3[%c0, %c0_1, %c0_2] : memref<1x4x256xf32, #tpu.memory_space<vmem>>, vector<1x4x256xf32>
    %4 = vector.shape_cast %3 : vector<1x4x256xf32> to vector<4x256xf32>
    %c0_3 = arith.constant 0 : index
    %c0_4 = arith.constant 0 : index
    %c0_5 = arith.constant 0 : index
    %5 = vector.load %arg4[%c0_3, %c0_4, %c0_5] : memref<1x8x256xf32, #tpu.memory_space<vmem>>, vector<1x8x256xf32>
    %6 = vector.shape_cast %5 : vector<1x8x256xf32> to vector<8x256xf32>
    %c0_6 = arith.constant 0 : index
    %c0_7 = arith.constant 0 : index
    %7 = vector.load %arg6[%c0_6, %c0_7] : memref<4x1xf32, #tpu.memory_space<vmem>>, vector<4x1xf32>
    %cst = arith.constant dense<0xFF800000> : vector<4xf32>
    %8 = vector.multi_reduction <maximumf>, %4, %cst [1] : vector<4x256xf32> to vector<4xf32>
    %9 = vector.shape_cast %8 : vector<4xf32> to vector<4x1xf32>
    %10 = arith.maximumf %7, %9 : vector<4x1xf32>
    %11 = arith.subf %7, %10 : vector<4x1xf32>
    %12 = math.exp %11 : vector<4x1xf32>
    %13 = vector.broadcast %10 : vector<4x1xf32> to vector<4x256xf32>
    %14 = arith.subf %4, %13 : vector<4x256xf32>
    %15 = math.exp %14 : vector<4x256xf32>
    %c0_8 = arith.constant 0 : index
    %c0_9 = arith.constant 0 : index
    %16 = vector.load %arg7[%c0_8, %c0_9] : memref<4x1xf32, #tpu.memory_space<vmem>>, vector<4x1xf32>
    %17 = arith.mulf %12, %16 : vector<4x1xf32>
    %cst_10 = arith.constant dense<0.000000e+00> : vector<4xf32>
    %18 = vector.multi_reduction <add>, %15, %cst_10 [1] : vector<4x256xf32> to vector<4xf32>
    %19 = vector.shape_cast %18 : vector<4xf32> to vector<4x1xf32>
    %20 = arith.addf %17, %19 : vector<4x1xf32>
    %c0_11 = arith.constant 0 : index
    %c0_12 = arith.constant 0 : index
    %21 = vector.load %arg7[%c0_11, %c0_12] : memref<4x1xf32, #tpu.memory_space<vmem>>, vector<4x1xf32>
    tpu.vector_store %arg7[%c0_11, %c0_12], %20 {strides = array<i32>} : memref<4x1xf32, #tpu.memory_space<vmem>>, vector<4x1xf32>,
    %c0_13 = arith.constant 0 : index
    %c0_14 = arith.constant 0 : index
    %22 = vector.load %arg6[%c0_13, %c0_14] : memref<4x1xf32, #tpu.memory_space<vmem>>, vector<4x1xf32>
    tpu.vector_store %arg6[%c0_13, %c0_14], %10 {strides = array<i32>} : memref<4x1xf32, #tpu.memory_space<vmem>>, vector<4x1xf32>,
    %cst_15 = arith.constant dense<0.000000e+00> : vector<8x4xf32>
    %23 = tpu.matmul %6, %15, %cst_15 {dimension_numbers = #tpu.dot_dimension_numbers<[1], [1], [0], [0], [0, 0, 1, 0], [], []>} : vector<8x256xf32>, vector<4x256xf32>, vector<8x4xf32> -> vector<8x4xf32>
    %c0_16 = arith.constant 0 : index
    %c0_17 = arith.constant 0 : index
    %24 = vector.load %arg8[%c0_16, %c0_17] : memref<8x4xf32, #tpu.memory_space<vmem>>, vector<8x4xf32>
    %25 = tpu.transpose %12, [1, 0] : vector<4x1xf32> -> vector<1x4xf32>
    %26 = vector.broadcast %25 : vector<1x4xf32> to vector<8x4xf32>
    %27 = arith.mulf %24, %26 : vector<8x4xf32>
    %28 = arith.addf %27, %23 : vector<8x4xf32>
    %c0_18 = arith.constant 0 : index
    %c0_19 = arith.constant 0 : index
    %29 = vector.load %arg8[%c0_18, %c0_19] : memref<8x4xf32, #tpu.memory_space<vmem>>, vector<8x4xf32>
    tpu.vector_store %arg8[%c0_18, %c0_19], %28 {strides = array<i32>} : memref<8x4xf32, #tpu.memory_space<vmem>>, vector<8x4xf32>,
    %c0_i32_20 = arith.constant 0 : i32
    %30 = arith.cmpi eq, %arg2, %c0_i32_20 : i32
    %31 = arith.extui %30 : i1 to i32
    %c0_i32_21 = arith.constant 0 : i32
    %32 = arith.cmpi ne, %31, %c0_i32_21 : i32
    scf.if %32 {
      %c0_22 = arith.constant 0 : index
      %c0_23 = arith.constant 0 : index
      %33 = vector.load %arg7[%c0_22, %c0_23] : memref<4x1xf32, #tpu.memory_space<vmem>>, vector<4x1xf32>
      %34 = tpu.reciprocal %33 : vector<4x1xf32> -> vector<4x1xf32>
      %c0_24 = arith.constant 0 : index
      %c0_25 = arith.constant 0 : index
      %35 = vector.load %arg8[%c0_24, %c0_25] : memref<8x4xf32, #tpu.memory_space<vmem>>, vector<8x4xf32>
      %36 = tpu.transpose %34, [1, 0] : vector<4x1xf32> -> vector<1x4xf32>
      %37 = vector.broadcast %36 : vector<1x4xf32> to vector<8x4xf32>
      %38 = arith.mulf %35, %37 : vector<8x4xf32>
      %c0_26 = arith.constant 0 : index
      %c0_27 = arith.constant 0 : index
      %c0_28 = arith.constant 0 : index
      %39 = vector.load %arg5[%c0_26, %c0_27, %c0_28] : memref<1x8x4xf32, #tpu.memory_space<vmem>>, vector<1x8x4xf32>
      %40 = vector.shape_cast %39 : vector<1x8x4xf32> to vector<8x4xf32>
      %41 = vector.shape_cast %38 : vector<8x4xf32> to vector<1x8x4xf32>
      tpu.vector_store %arg5[%c0_26, %c0_27, %c0_28], %41 {strides = array<i32>} : memref<1x8x4xf32, #tpu.memory_space<vmem>>, vector<1x8x4xf32>,
    } else {
    }
    return
  }
  func.func @transform_0(%arg0: i32, %arg1: i32, %arg2: i32) -> (i32, i32, i32) {
    %c0_i32 = arith.constant 0 : i32
    %c0_i32_0 = arith.constant 0 : i32
    return %arg0, %c0_i32, %arg2 : i32, i32, i32
  }
  func.func @transform_1(%arg0: i32, %arg1: i32, %arg2: i32) -> (i32, i32, i32) {
    %c0_i32 = arith.constant 0 : i32
    return %arg0, %arg1, %arg2 : i32, i32, i32
  }
  func.func @transform_2(%arg0: i32, %arg1: i32, %arg2: i32) -> (i32, i32, i32) {
    %c0_i32 = arith.constant 0 : i32
    %c0_i32_0 = arith.constant 0 : i32
    return %arg0, %arg1, %c0_i32 : i32, i32, i32
  }
}

</mosaic_0001>

<llo_original>
// kernel: tpu_custom_call.1
$region0: #{tpu_custom_call.1}
  #allocation0 [shape = 'u32[]', space=smem, size = 0x4, offset = 0x4, fixed_abs, tag = 'smem constant byte address 0x4 - core index']
  #allocation1 [shape = 'u32[144,128]{1,0:T(1,128)}', space=vmem, size = 0x12000, scoped, tag = 'internal scratch']
  #allocation2 [shape = 'f32[4,1]{1,0:T(4,128)}', space=vmem, size = 0x800, scoped, tag = 'scratch operand']
  #allocation3 [shape = 'f32[4,1]{1,0:T(4,128)}', space=vmem, size = 0x800, scoped, tag = 'scratch operand']
  #allocation4 [shape = 'f32[8,4]{1,0:T(8,128)}', space=vmem, size = 0x1000, scoped, tag = 'scratch operand']
  %s0 = inlined_call_operand.hbm [shape: f32[2,4,256], index: 0, kind: input, shape index: {}]
  %s1 = inlined_call_operand.hbm [shape: f32[2,8,256], index: 1, kind: input, shape index: {}]
  %s2 = inlined_call_operand.vmem [shape: f32[2,8,4], index: 2, kind: output, shape index: {}]
  %s3 = sld [smem:[#allocation0]]
  $region57: #{tpu_custom_call.1} parent=0
    _
  %s5 = ssub.s32 1, %s3
  %s6 = scalar_select 0, %s5, %s3
  $region1: #{tpu_custom_call.1} parent=0
    #allocation5 [shape = 'u8[8192]{0}', space=vmem, size = 0x2000, scoped, tag = 'input window, operand 0']
    #allocation6 [shape = 's32[2]{0}', space=sflag, size = 0x8, scoped, tag = 'scoped memory for tpu_custom_call.1']
    #allocation7 [shape = 'u8[16384]{0}', space=vmem, size = 0x4000, scoped, tag = 'input window, operand 1']
    #allocation8 [shape = 's32[2]{0}', space=sflag, size = 0x8, scoped, tag = 'scoped memory for tpu_custom_call.1']
    %7 = vsyncpa [#allocation6], 0
    %s8 = scalar_lea.sflag [#allocation6], 1
    %9 = vsyncpa %s8, 0
    %10 = vsyncpa [#allocation8], 0
    %s11 = scalar_lea.sflag [#allocation8], 1
    %12 = vsyncpa %s11, 0
    loop: start=0, step=1, limit=4
    $region2: #{tpu_custom_call.1} parent=1 // loop_pre_header
      _
    $region3: #{tpu_custom_call.1} parent=1 // loop_header
      %s14 = sphi 0, %s18
      %p15 = scmp.ge.s32.totalorder %s14, 4
      %s21 = sphi 0, %s40
      %s22 = sphi 0, %s36
      %s23 = sphi 0, %s32
      %s24 = sphi 0, %s21
      %s25 = sphi 0, %s22
      %s26 = sphi 0, %s23
      %s27 = sphi 0, %s24
      %s28 = sphi 0, %s25
      %s29 = sphi 0, %s26
      %s45 = sphi 0, %s47
      %s48 = sphi 0, %s45
      %s49 = sphi 0, %s48
      %s65 = sphi 0, %s49
      %s75 = sphi 0, %s77
      %s78 = sphi 0, %s75
      %s79 = sphi 0, %s78
      %s95 = sphi 0, %s79
      %s103 = sphi 0, %s105
      %s106 = sphi 0, %s103
      %s107 = sphi 0, %s106
      %s123 = sphi 0, %s107
    $region4: #{tpu_custom_call.1} parent=1 // loop_header_branch
      %17 = sbr.rel (%p15) target = $region8
    $region5: #{tpu_custom_call.1} parent=1 // loop_body
      %s19 = ssub.s32 %s14, 1
      %s20 = ssub.s32 %s14, 2
      %s30 = sadd.s32 1, %s23
      %p31 = scmp.ge.s32.totalorder %s30, 1
      %s32 = scalar_select %p31, 0, %s30
      %s33 = sadd.s32 1, %s22
      %s34 = scalar_select %p31, %s33, %s22
      %p35 = scmp.ge.s32.totalorder %s34, 1
      %s36 = scalar_select %p35, 0, %s34
      %s37 = sadd.s32 1, %s21
      %s38 = scalar_select %p35, %s37, %s21
      %p39 = scmp.ge.s32.totalorder %s38, 2
      %s40 = scalar_select %p39, 0, %s38
      %s41 = ssub.s32 %s21, %s40
      %s42 = ssub.s32 %s23, %s32
      %s43 = sor.u32 %s41, %s42
      %p44 = scmp.eq.s32.totalorder %s43, 0
      %s46 = sadd.s32 %s45, 1
      %s47 = scalar_select %p44, %s45, %s46
      %p50 = pneg %p44
      %p51 = scmp.eq.s32.totalorder %s14, 1
      %p52 = por %p50, %p51
      %p53 = scmp.ne.s32.totalorder %s45, %s48
      %p54 = scmp.eq.s32.totalorder %s14, 0
      %p55 = por %p53, %p54
      %p56 = scmp.ne.s32.totalorder %s45, %s48
      %p57 = scmp.eq.s32.totalorder %s19, 1
      %p58 = por %p56, %p57
      %p59 = scmp.ne.s32.totalorder %s48, %s49
      %p60 = scmp.eq.s32.totalorder %s19, 0
      %p61 = por %p59, %p60
      %p62 = scmp.ne.s32.totalorder %s48, %s49
      %p63 = scmp.eq.s32.totalorder %s20, 1
      %p64 = por %p62, %p63
      %p66 = scmp.ne.s32.totalorder %s49, %s65
      %p67 = scmp.eq.s32.totalorder %s20, 0
      %p68 = por %p66, %p67
      %s69 = ssub.s32 %s21, %s40
      %s70 = ssub.s32 %s22, %s36
      %s71 = sor.u32 %s69, %s70
      %s72 = ssub.s32 %s23, %s32
      %s73 = sor.u32 %s71, %s72
      %p74 = scmp.eq.s32.totalorder %s73, 0
      %s76 = sadd.s32 %s75, 1
      %s77 = scalar_select %p74, %s75, %s76
      %p80 = pneg %p74
      %p81 = scmp.eq.s32.totalorder %s14, 1
      %p82 = por %p80, %p81
      %p83 = scmp.ne.s32.totalorder %s75, %s78
      %p84 = scmp.eq.s32.totalorder %s14, 0
      %p85 = por %p83, %p84
      %p86 = scmp.ne.s32.totalorder %s75, %s78
      %p87 = scmp.eq.s32.totalorder %s19, 1
      %p88 = por %p86, %p87
      %p89 = scmp.ne.s32.totalorder %s78, %s79
      %p90 = scmp.eq.s32.totalorder %s19, 0
      %p91 = por %p89, %p90
      %p92 = scmp.ne.s32.totalorder %s78, %s79
      %p93 = scmp.eq.s32.totalorder %s20, 1
      %p94 = por %p92, %p93
      %p96 = scmp.ne.s32.totalorder %s79, %s95
      %p97 = scmp.eq.s32.totalorder %s20, 0
      %p98 = por %p96, %p97
      %s99 = ssub.s32 %s21, %s40
      %s100 = ssub.s32 %s22, %s36
      %s101 = sor.u32 %s99, %s100
      %p102 = scmp.eq.s32.totalorder %s101, 0
      %s104 = sadd.s32 %s103, 1
      %s105 = scalar_select %p102, %s103, %s104
      %p108 = pneg %p102
      %p109 = scmp.eq.s32.totalorder %s14, 1
      %p110 = por %p108, %p109
      %p111 = scmp.ne.s32.totalorder %s103, %s106
      %p112 = scmp.eq.s32.totalorder %s14, 0
      %p113 = por %p111, %p112
      %p114 = scmp.ne.s32.totalorder %s103, %s106
      %p115 = scmp.eq.s32.totalorder %s19, 1
      %p116 = por %p114, %p115
      %p117 = scmp.ne.s32.totalorder %s106, %s107
      %p118 = scmp.eq.s32.totalorder %s19, 0
      %p119 = por %p117, %p118
      %p120 = scmp.ne.s32.totalorder %s106, %s107
      %p121 = scmp.eq.s32.totalorder %s20, 1
      %p122 = por %p120, %p121
      %p124 = scmp.ne.s32.totalorder %s107, %s123
      %p125 = scmp.eq.s32.totalorder %s20, 0
      %p126 = por %p124, %p125
      %p127 = scmp.le.s32.totalorder 1, %s14
      %p128 = scmp.lt.s32.totalorder %s14, 3
      %p129 = pnand %p127, %p128
      %p130 = pneg %p129
      // Predicated region
      $region9: #{tpu_custom_call.1} parent=5 // pred_check
        _
      $region10: #{tpu_custom_call.1} parent=5 // pred_check_branch
        %132 = sbr.rel (%p129) target = $region12
      $region11: #{tpu_custom_call.1} parent=5 // pred_region
        %s133 = ssub.s32 %s14, 1
      $region12: #{tpu_custom_call.1} parent=5 // pred_fallthru
        _
      %p134 = scmp.lt.s32.totalorder %s14, 2
      // Predicated region
      $region13: #{tpu_custom_call.1} parent=5 // pred_check
        %p135 = pneg %p134
      $region14: #{tpu_custom_call.1} parent=5 // pred_check_branch
        %137 = sbr.rel (%p135) target = $region16
      $region15: #{tpu_custom_call.1} parent=5 // pred_region
        // Predicated region
        $region17: #{tpu_custom_call.1} parent=15 // pred_check
          %p138 = pneg %p55
        $region18: #{tpu_custom_call.1} parent=15 // pred_check_branch
          %140 = sbr.rel (%p138) target = $region20
        $region19: #{tpu_custom_call.1} parent=15 // pred_region
          %s141 = sand.u32 %s45, 1
          %s142 = scalar_lea.sflag [#allocation6], %s141
          %s143 = sand.u32 %s45, 1
          %s144 = smul.addr %s143, 8
          %s145 = scalar_lea.vmem [#allocation5], %s144
          %s146 = smul.u32 2, %s23
          %s148 = ssub.s32 128, 128
          %149 = vsyncadd %s142, %s148
          %s150 = smul.addr %s21, 2
          %s151 = sadd.s32 %s146, %s150
          %s152 = smul.addr %s151, 64
          %s153 = scalar_lea.hbm %s0, %s152
          %s155 = sshll.u32 %s145, 4
          %s156 = int_to_ptr.vmem [resolvable:$true] %s155
          %158 = dma.hbm_to_vmem [thread:$0]  %s153, 128, %s156, %s142
        $region20: #{tpu_custom_call.1} parent=15 // pred_fallthru
          _
        // Predicated region
        $region21: #{tpu_custom_call.1} parent=15 // pred_check
          %p159 = pneg %p85
        $region22: #{tpu_custom_call.1} parent=15 // pred_check_branch
          %161 = sbr.rel (%p159) target = $region24
        $region23: #{tpu_custom_call.1} parent=15 // pred_region
          %s162 = sand.u32 %s75, 1
          %s163 = scalar_lea.sflag [#allocation8], %s162
          %s164 = sand.u32 %s75, 1
          %s165 = smul.addr %s164, 16
          %s166 = scalar_lea.vmem [#allocation7], %s165
          %s167 = smul.u32 2, %s23
          %s169 = ssub.s32 256, 256
          %170 = vsyncadd %s163, %s169
          %s171 = smul.addr %s22, 2
          %s172 = sadd.s32 %s167, %s171
          %s173 = smul.addr %s21, 2
          %s174 = sadd.s32 %s172, %s173
          %s175 = smul.addr %s174, 128
          %s176 = scalar_lea.hbm %s1, %s175
          %s178 = sshll.u32 %s166, 4
          %s179 = int_to_ptr.vmem [resolvable:$true] %s178
          %181 = dma.hbm_to_vmem [thread:$0]  %s176, 256, %s179, %s163
        $region24: #{tpu_custom_call.1} parent=15 // pred_fallthru
          _
      $region16: #{tpu_custom_call.1} parent=5 // pred_fallthru
        _
      %p182 = scmp.le.s32.totalorder 1, %s14
      %p183 = scmp.lt.s32.totalorder %s14, 3
      %p184 = pnand %p182, %p183
      %p185 = pneg %p184
      // Predicated region
      $region25: #{tpu_custom_call.1} parent=5 // pred_check
        _
      $region26: #{tpu_custom_call.1} parent=5 // pred_check_branch
        %187 = sbr.rel (%p184) target = $region28
      $region27: #{tpu_custom_call.1} parent=5 // pred_region
        %s188 = ssub.s32 %s14, 1
        %s189 = sand.u32 %s48, 1
        %s190 = scalar_lea.sflag [#allocation6], %s189
        %s191 = sand.u32 %s48, 1
        %s192 = smul.addr %s191, 8
        %s193 = scalar_lea.vmem [#allocation5], %s192
        // Predicated region
        $region29: #{tpu_custom_call.1} parent=27 // pred_check
          %p194 = pneg %p61
        $region30: #{tpu_custom_call.1} parent=27 // pred_check_branch
          %196 = sbr.rel (%p194) target = $region32
        $region31: #{tpu_custom_call.1} parent=27 // pred_region
          %197 = dma.done %s190, 128
        $region32: #{tpu_custom_call.1} parent=27 // pred_fallthru
          _
        %s198 = sand.u32 %s78, 1
        %s199 = scalar_lea.sflag [#allocation8], %s198
        %s200 = sand.u32 %s78, 1
        %s201 = smul.addr %s200, 16
        %s202 = scalar_lea.vmem [#allocation7], %s201
        // Predicated region
        $region33: #{tpu_custom_call.1} parent=27 // pred_check
          %p203 = pneg %p91
        $region34: #{tpu_custom_call.1} parent=27 // pred_check_branch
          %205 = sbr.rel (%p203) target = $region36
        $region35: #{tpu_custom_call.1} parent=27 // pred_region
          %206 = dma.done %s199, 256
        $region36: #{tpu_custom_call.1} parent=27 // pred_fallthru
          _
        %s207 = sand.u32 %s48, 1
        %s208 = scalar_lea.sflag [#allocation6], %s207
        %s209 = sand.u32 %s48, 1
        %s210 = smul.addr %s209, 8
        %s211 = scalar_lea.vmem [#allocation5], %s210
        %p212 = pneg %p61
        %p213 = pneg %p58
        %s214 = sand.u32 %s78, 1
        %s215 = scalar_lea.sflag [#allocation8], %s214
        %s216 = sand.u32 %s78, 1
        %s217 = smul.addr %s216, 16
        %s218 = scalar_lea.vmem [#allocation7], %s217
        %p219 = pneg %p91
        %p220 = pneg %p88
        %p221 = pneg %p119
        %p222 = pneg %p116
        %p223 = scmp.lt.s32.totalorder %s24, 1
        %s224 = scalar_select %p223, %s24, 1
        %p225 = scmp.lt.s32.totalorder %s25, 0
        %s226 = scalar_select %p225, %s25, 0
        %s227 = sadd.s32 %s226, %s224
        %s228 = smul.addr %s227, 8
        %s229 = scalar_lea.vmem %s2, %s228
        %s230 = smul.u32 2, %s26
        %s231 = smul.u32 2, %s26
        %p232 = scmp.lt.s32.totalorder %s24, 1
        %s233 = scalar_select %p232, %s24, 1
        %p234 = scmp.lt.s32.totalorder %s25, 0
        %s235 = scalar_select %p234, %s25, 0
        %s236 = sadd.s32 %s235, %s233
        %s237 = smul.addr %s236, 8
        %s238 = scalar_lea.vmem %s2, %s237
        %p239 = scmp.eq.s32.totalorder %s26, 0
        // Predicated region
        $region37: #{tpu_custom_call.1} parent=27 // pred_check
          %p240 = pneg %p239
        $region38: #{tpu_custom_call.1} parent=27 // pred_check_branch
          %242 = sbr.rel (%p240) target = $region40
        $region39: #{tpu_custom_call.1} parent=27 // pred_region
          %vm243 = vcmask 3072
          %244 = vst.msk [vmem:[#allocation2] sm:$0xf] %vm243, -inf
          %245 = vst.msk [vmem:[#allocation3] sm:$0xf] %vm243, 0.0
          %vm246 = vcmask 31744
          %247 = vst.msk [vmem:[#allocation4] sm:$0xff] %vm246, 0.0
        $region40: #{tpu_custom_call.1} parent=27 // pred_fallthru
          _
        %v248 = vld [vmem:[%s193] sm:$0xff]
        %v249 = vld [vmem:[%s202] sm:$0xff]
        %v250 = vld [vmem:[%s202 + $0x8] sm:$0xff]
        %v251 = vld [vmem:[#allocation2] sm:$0xf]
        %v253 = vcombine.high %v248, %v248
        %vm255 = vcmask 1043456
        %v256 = vsel %vm255, %v248, -inf
        %v257 = vsel %vm255, %v253, -inf
        %v258 = vmax.f32 %v256, %v257
        %259 = vmax.xlane.f32.xlu0 %v258
        %v260 = vpop.xlane.xlu0 %259
        %v261 = vmax.f32 %v251, %v260
        %v262 = vsub.f32 %v251, %v261
        %v263 = vmul.f32 %v262, 1.442695
        %v264 = vpow.pop %v263
        %266 = vset.pattern.permute.xlu0 0
        %267 = vperm.xlu0 %266, %v261
        %v268 = vpop.permute.xlu0 %267
        %v270 = vunpack.c.l.s4 839922192
        %v271 = vunpack.c.0.s8 %v270
        %v272 = vlaneseq
        %v273 = vshrl.u32 %v272, 7
        %v274 = vsub.s32 %v271, %v273
        %v275 = vrot.slane %v268, %v274
        %v277 = vsub.f32 %v248, %v275
        %v278 = vmul.f32 %v277, 1.442695
        %v279 = vpow.pop %v278
        %v280 = vld [vmem:[#allocation3] sm:$0xf]
        %v281 = vmul.f32 %v264, %v280
        %v283 = vcombine.high %v279, %v279
        %v285 = vsel %vm255, %v279, 0.0
        %v286 = vsel %vm255, %v283, 0.0
        %v287 = vadd.f32 %v285, %v286
        %288 = vadd.xlane.f32.xlu0 %v287
        %v289 = vpop.xlane.xlu0 %288
        %v290 = vadd.f32 %v281, %v289
        %vm291 = vcmask 3072
        %292 = vst.msk [vmem:[#allocation3] sm:$0xf] %vm291, %v290
        %293 = vst.msk [vmem:[#allocation2] sm:$0xf] %vm291, %v261
        %294 = vmatprep.subr.mxu0 0.0
        %295 = vmatpush1.xpose.msra.mxu0 0.0
        %296 = vmatprep.subr.mxu0 0.0
        %297 = vmatpush1.xpose.msra.mxu0 0.0
        %298 = vmatprep.subr.mxu0 0.0
        %299 = vmatpush1.xpose.msra.mxu0 0.0
        %300 = vmatprep.subr.mxu0 0.0
        %301 = vmatpush1.xpose.msra.mxu0 0.0
        %302 = vmatprep.subr.mxu0 0.0
        %303 = vmatpush1.xpose.msra.mxu0 0.0
        %304 = vmatprep.subr.mxu0 0.0
        %305 = vmatpush1.xpose.msra.mxu0 0.0
        %306 = vmatprep.subr.mxu0 0.0
        %307 = vmatpush1.xpose.msra.mxu0 0.0
        %308 = vmatprep.subr.mxu0 0.0
        %309 = vmatpush1.xpose.msra.mxu0 0.0
        %310 = vmatprep.subr.mxu0 0.0
        %311 = vmatpush1.xpose.msra.mxu0 0.0
        %312 = vmatprep.subr.mxu0 0.0
        %313 = vmatpush1.xpose.msra.mxu0 0.0
        %314 = vmatprep.subr.mxu0 0.0
        %315 = vmatpush1.xpose.msra.mxu0 0.0
        %316 = vmatprep.subr.mxu0 0.0
        %317 = vmatpush1.xpose.msra.mxu0 0.0
        %318 = vmatprep.subr.mxu0 0.0
        %319 = vmatpush1.xpose.msra.mxu0 0.0
        %320 = vmatprep.subr.mxu0 0.0
        %321 = vmatpush1.xpose.msra.mxu0 0.0
        %322 = vmatprep.subr.mxu0 0.0
        %323 = vmatpush1.xpose.msra.mxu0 0.0
        %324 = vmatprep.subr.mxu0 %v283
        %325 = vmatpush1.xpose.msra.mxu0 %v279
        %326 = vmatprep.subr.mxu0 0.0
        %327 = vmatpush2.xpose.msra.mxu0 0.0
        %328 = vmatprep.subr.mxu0 0.0
        %329 = vmatpush2.xpose.msra.mxu0 0.0
        %330 = vmatprep.subr.mxu0 0.0
        %331 = vmatpush2.xpose.msra.mxu0 0.0
        %332 = vmatprep.subr.mxu0 0.0
        %333 = vmatpush2.xpose.msra.mxu0 0.0
        %334 = vmatprep.subr.mxu0 0.0
        %335 = vmatpush2.xpose.msra.mxu0 0.0
        %336 = vmatprep.subr.mxu0 0.0
        %337 = vmatpush2.xpose.msra.mxu0 0.0
        %338 = vmatprep.subr.mxu0 0.0
        %339 = vmatpush2.xpose.msra.mxu0 0.0
        %340 = vmatprep.subr.mxu0 0.0
        %341 = vmatpush2.xpose.msra.mxu0 0.0
        %342 = vmatprep.subr.mxu0 0.0
        %343 = vmatpush2.xpose.msra.mxu0 0.0
        %344 = vmatprep.subr.mxu0 0.0
        %345 = vmatpush2.xpose.msra.mxu0 0.0
        %346 = vmatprep.subr.mxu0 0.0
        %347 = vmatpush2.xpose.msra.mxu0 0.0
        %348 = vmatprep.subr.mxu0 0.0
        %349 = vmatpush2.xpose.msra.mxu0 0.0
        %350 = vmatprep.subr.mxu0 0.0
        %351 = vmatpush2.xpose.msra.mxu0 0.0
        %352 = vmatprep.subr.mxu0 0.0
        %353 = vmatpush2.xpose.msra.mxu0 0.0
        %354 = vmatprep.subr.mxu0 0.0
        %355 = vmatpush2.xpose.msra.mxu0 0.0
        %356 = vmatprep.subr.mxu0 0.0
        %357 = vmatpush2.xpose.msra.mxu0 0.0
        %358 = vmatprep.mubr.f32.mxu0 %v250
        %359 = vmatmul.mubr.f32.gmra.mxu0 %v249
        %v360 = vpop.f32.mrf.mxu0
        %v361 = vadd.f32 0.0, %v360
        %v362 = vpop.f32.mrf.mxu0
        %363 = vdwg.mxu0
        %v364 = vld [vmem:[#allocation4] sm:$0xff]
        %365 = vxpose.xlu0.b32.start [1/16] %v264, 128
        %366 = vxpose.xlu0.b32.cont [2/16] 0.0, 128
        %367 = vxpose.xlu0.b32.cont [3/16] 0.0, 128
        %368 = vxpose.xlu0.b32.cont [4/16] 0.0, 128
        %369 = vxpose.xlu0.b32.cont [5/16] 0.0, 128
        %370 = vxpose.xlu0.b32.cont [6/16] 0.0, 128
        %371 = vxpose.xlu0.b32.cont [7/16] 0.0, 128
        %372 = vxpose.xlu0.b32.cont [8/16] 0.0, 128
        %373 = vxpose.xlu0.b32.cont [9/16] 0.0, 128
        %374 = vxpose.xlu0.b32.cont [10/16] 0.0, 128
        %375 = vxpose.xlu0.b32.cont [11/16] 0.0, 128
        %376 = vxpose.xlu0.b32.cont [12/16] 0.0, 128
        %377 = vxpose.xlu0.b32.cont [13/16] 0.0, 128
        %378 = vxpose.xlu0.b32.cont [14/16] 0.0, 128
        %379 = vxpose.xlu0.b32.cont [15/16] 0.0, 128
        %380 = vxpose.xlu0.b32.end [16/16] 0.0, 128
        %v381 = vpop.trf.xlu0
        %v382 = vpop.trf.xlu0
        %v383 = vpop.trf.xlu0
        %v384 = vpop.trf.xlu0
        %v385 = vpop.trf.xlu0
        %v386 = vpop.trf.xlu0
        %v387 = vpop.trf.xlu0
        %v388 = vpop.trf.xlu0
        %v389 = vpop.trf.xlu0
        %v390 = vpop.trf.xlu0
        %v391 = vpop.trf.xlu0
        %v392 = vpop.trf.xlu0
        %v393 = vpop.trf.xlu0
        %v394 = vpop.trf.xlu0
        %v395 = vpop.trf.xlu0
        %v396 = vpop.trf.xlu0
        %v397 = vlaneseq
        %v398 = vshrl.u32 %v397, 7
        %v399 = vsub.s32 0, %v398
        %v400 = vrot.slane %v381, %v399
        %v401 = vmul.f32 %v364, %v400
        %v402 = vadd.f32 %v401, %v361
        %vm403 = vcmask 31744
        %404 = vst.msk [vmem:[#allocation4] sm:$0xff] %vm403, %v402
        // Predicated region
        $region41: #{tpu_custom_call.1} parent=27 // pred_check
          %p405 = pneg %p239
        $region42: #{tpu_custom_call.1} parent=27 // pred_check_branch
          %407 = sbr.rel (%p405) target = $region44
        $region43: #{tpu_custom_call.1} parent=27 // pred_region
          %v408 = vld [vmem:[#allocation3] sm:$0xf]
          %v409 = vrcp.pop %v408
          %v410 = vld [vmem:[#allocation4] sm:$0xff]
          %411 = vxpose.xlu0.b32.start [1/16] %v409, 128
          %412 = vxpose.xlu0.b32.cont [2/16] 0.0, 128
          %413 = vxpose.xlu0.b32.cont [3/16] 0.0, 128
          %414 = vxpose.xlu0.b32.cont [4/16] 0.0, 128
          %415 = vxpose.xlu0.b32.cont [5/16] 0.0, 128
          %416 = vxpose.xlu0.b32.cont [6/16] 0.0, 128
          %417 = vxpose.xlu0.b32.cont [7/16] 0.0, 128
          %418 = vxpose.xlu0.b32.cont [8/16] 0.0, 128
          %419 = vxpose.xlu0.b32.cont [9/16] 0.0, 128
          %420 = vxpose.xlu0.b32.cont [10/16] 0.0, 128
          %421 = vxpose.xlu0.b32.cont [11/16] 0.0, 128
          %422 = vxpose.xlu0.b32.cont [12/16] 0.0, 128
          %423 = vxpose.xlu0.b32.cont [13/16] 0.0, 128
          %424 = vxpose.xlu0.b32.cont [14/16] 0.0, 128
          %425 = vxpose.xlu0.b32.cont [15/16] 0.0, 128
          %426 = vxpose.xlu0.b32.end [16/16] 0.0, 128
          %v427 = vpop.trf.xlu0
          %v428 = vpop.trf.xlu0
          %v429 = vpop.trf.xlu0
          %v430 = vpop.trf.xlu0
          %v431 = vpop.trf.xlu0
          %v432 = vpop.trf.xlu0
          %v433 = vpop.trf.xlu0
          %v434 = vpop.trf.xlu0
          %v435 = vpop.trf.xlu0
          %v436 = vpop.trf.xlu0
          %v437 = vpop.trf.xlu0
          %v438 = vpop.trf.xlu0
          %v439 = vpop.trf.xlu0
          %v440 = vpop.trf.xlu0
          %v441 = vpop.trf.xlu0
          %v442 = vpop.trf.xlu0
          %v443 = vlaneseq
          %v444 = vshrl.u32 %v443, 7
          %v445 = vsub.s32 0, %v444
          %v446 = vrot.slane %v427, %v445
          %v447 = vmul.f32 %v410, %v446
          %448 = vst.msk [vmem:[%s238] sm:$0xff] %vm403, %v447
        $region44: #{tpu_custom_call.1} parent=27 // pred_fallthru
          _
        %p449 = scmp.lt.s32.totalorder %s24, 1
        %s450 = scalar_select %p449, %s24, 1
        %p451 = scmp.lt.s32.totalorder %s25, 0
        %s452 = scalar_select %p451, %s25, 0
        %s453 = sadd.s32 %s452, %s450
        %s454 = smul.addr %s453, 8
        %s455 = scalar_lea.vmem %s2, %s454
        // Predicated region
        $region45: #{tpu_custom_call.1} parent=27 // pred_check
          %p456 = pneg %p116
        $region46: #{tpu_custom_call.1} parent=27 // pred_check_branch
          %458 = sbr.rel (%p456) target = $region48
        $region47: #{tpu_custom_call.1} parent=27 // pred_region
          _
        $region48: #{tpu_custom_call.1} parent=27 // pred_fallthru
          _
      $region28: #{tpu_custom_call.1} parent=5 // pred_fallthru
        _
      %p459 = scmp.le.s32.totalorder 2, %s14
      // Predicated region
      $region49: #{tpu_custom_call.1} parent=5 // pred_check
        %p460 = pneg %p459
      $region50: #{tpu_custom_call.1} parent=5 // pred_check_branch
        %462 = sbr.rel (%p460) target = $region52
      $region51: #{tpu_custom_call.1} parent=5 // pred_region
        %s463 = ssub.s32 %s14, 2
        // Predicated region
        $region53: #{tpu_custom_call.1} parent=51 // pred_check
          %p464 = pneg %p122
        $region54: #{tpu_custom_call.1} parent=51 // pred_check_branch
          %466 = sbr.rel (%p464) target = $region56
        $region55: #{tpu_custom_call.1} parent=51 // pred_region
          %p467 = scmp.lt.s32.totalorder %s27, 1
          %s468 = scalar_select %p467, %s27, 1
          %p469 = scmp.lt.s32.totalorder %s28, 0
          %s470 = scalar_select %p469, %s28, 0
          %s471 = sadd.s32 %s470, %s468
          %s472 = smul.addr %s471, 8
          %s473 = scalar_lea.vmem %s2, %s472
        $region56: #{tpu_custom_call.1} parent=51 // pred_fallthru
          _
      $region52: #{tpu_custom_call.1} parent=5 // pred_fallthru
        _
    $region6: #{tpu_custom_call.1} parent=1 // loop_footer
      %s18 = sadd.s32 1, %s14
    $region7: #{tpu_custom_call.1} parent=1 // loop_footer_branch
      %13 = sbr.rel target = $region3
    $region8: #{tpu_custom_call.1} parent=1 // loop_exit
      _
    %474 = vsyncpa [#allocation6], 1
    %s475 = scalar_lea.sflag [#allocation6], 1
    %476 = vsyncpa %s475, 1
    %477 = vsyncpa [#allocation8], 1
    %s478 = scalar_lea.sflag [#allocation8], 1
    %479 = vsyncpa %s478, 1

</llo_original>
